<compile_context>
chip_gen: v6e
topology: v6e:2x2x1
jax: 0.10.0
libtpu: 0.0.40
codegen_flags: <defaults>
</compile_context>

<pallas_src>
from functools import partial

import jax
import jax.numpy as jnp
from jax import lax
from jax.experimental import pallas as pl
from jax.experimental.pallas import tpu as pltpu


def _fused_linear_kernel(x2_ref, x1_ref, w2_ref, w1_ref, b_ref, o_ref):
    # x2: (B, K2), w2: (N, K2), x1: (B, K1), w1: (N, K1), b: (1, N) -> o: (B, N)
    # Contract on the last (lane) axis of both operands: no transposes needed.
    dn = (((1,), (1,)), ((), ()))
    acc = lax.dot_general(x2_ref[...], w2_ref[...], dn,
                          preferred_element_type=jnp.float32)
    acc += lax.dot_general(x1_ref[...], w1_ref[...], dn,
                           preferred_element_type=jnp.float32)
    o_ref[...] = (acc + b_ref[...]).astype(o_ref.dtype)


def _pallas_fused_linear(x2_flat, x1_flat, w2, w1, bias_row):
    B, K2 = x2_flat.shape
    _, K1 = x1_flat.shape
    N = w2.shape[0]
    itemsize = jnp.dtype(x2_flat.dtype).itemsize

    cost = pl.CostEstimate(
        flops=2 * B * (K1 + K2) * N,
        transcendentals=0,
        bytes_accessed=(B * (K1 + K2) + N * (K1 + K2)) * itemsize
        + N * 4 + B * N * 4,
    )

    return pl.pallas_call(
        _fused_linear_kernel,
        out_shape=jax.ShapeDtypeStruct((B, N), jnp.float32),
        grid_spec=pl.GridSpec(
            grid=(1,),
            in_specs=[
                pl.BlockSpec((B, K2), lambda i: (0, 0)),
                pl.BlockSpec((B, K1), lambda i: (0, 0)),
                pl.BlockSpec((N, K2), lambda i: (0, 0)),
                pl.BlockSpec((N, K1), lambda i: (0, 0)),
                pl.BlockSpec((1, N), lambda i: (0, 0)),
            ],
            out_specs=pl.BlockSpec((B, N), lambda i: (0, 0)),
        ),
        compiler_params=pltpu.CompilerParams(
            dimension_semantics=("arbitrary",)),
        cost_estimate=cost,
    )(x2_flat, x1_flat, w2, w1, bias_row)


@partial(jax.jit, static_argnames=("compute_dtype",))
def lin_forward(x1, x2, weight, bias, *, compute_dtype=jnp.bfloat16):
    """Exact semantics of lin.forward (NCHW inputs), pad/concat fused away.

    x1: (B, C1, H1, W1), x2: (B, C2, H2, W2) with H2 >= H1, W2 >= W1.
    weight: (N, (C1 + C2) * H2 * W2)  (PyTorch nn.Linear layout), bias: (N,).
    """
    B, C1, H1, W1 = x1.shape
    _, C2, H2, W2 = x2.shape
    diffY = H2 - H1
    diffX = W2 - W1
    dy0 = diffY // 2
    dx0 = diffX // 2

    K2 = C2 * H2 * W2          # columns paired with x2 (comes first in concat)
    K1 = C1 * H1 * W1          # columns paired with the un-padded interior of x1
    N = weight.shape[0]

    # Flatten each input directly (channel-major == torch reshape on NCHW);
    # no activation pad / concat copies.
    x2_flat = x2.reshape(B, K2).astype(compute_dtype)
    x1_flat = x1.reshape(B, K1).astype(compute_dtype)

    # Split the weight along K.  The x1 half is sliced down to the interior
    # window — the spatial zero-padding of x1 contributes nothing to the dot.
    w2 = weight[:, :K2].astype(compute_dtype)
    w1 = (weight[:, K2:]
          .reshape(N, C1, H2, W2)[:, :, dy0:dy0 + H1, dx0:dx0 + W1]
          .reshape(N, K1)
          .astype(compute_dtype))
    bias_row = bias.reshape(1, N).astype(jnp.float32)

    return _pallas_fused_linear(x2_flat, x1_flat, w2, w1, bias_row)


if __name__ == "__main__":
    key = jax.random.PRNGKey(0)
    k1, k2, kw, kb = jax.random.split(key, 4)

    # Small shapes: x1 is smaller spatially and gets (virtually) padded to x2's H,W.
    B, C1, C2 = 2, 3, 4
    H2, W2 = 16, 16
    H1, W1 = 12, 12
    out_ch = 32
    in_ch = (C1 + C2) * H2 * W2         # 7 * 16 * 16 = 1792

    x1 = jax.random.normal(k1, (B, C1, H1, W1), dtype=jnp.float32)
    x2 = jax.random.normal(k2, (B, C2, H2, W2), dtype=jnp.float32)

    # Deterministic nn.Linear-style params: weight (out_ch, in_ch), bias (out_ch,)
    bound = 1.0 / jnp.sqrt(in_ch)
    weight = jax.random.uniform(kw, (out_ch, in_ch), jnp.float32, -bound, bound)
    bias = jax.random.uniform(kb, (out_ch,), jnp.float32, -bound, bound)

    # Reference in plain JAX (explicit pad + concat + flatten + f32 matmul).
    x1p = jnp.pad(x1, ((0, 0), (0, 0), (2, 2), (2, 2)))
    ref = jnp.concatenate([x2, x1p], axis=1).reshape(B, -1) @ weight.T + bias

    # f32 path: must match tightly.
    out_f32 = lin_forward(x1, x2, weight, bias, compute_dtype=jnp.float32)
    jax.block_until_ready(out_f32)
    assert jnp.allclose(out_f32, ref, atol=1e-4), "f32 mismatch vs reference"

    # bf16-streamed path (default): f32 accumulation, looser tolerance.
    out_bf16 = lin_forward(x1, x2, weight, bias)
    jax.block_until_ready(out_bf16)
    assert jnp.allclose(out_bf16, ref, atol=2e-2, rtol=2e-2), \
        "bf16 mismatch vs reference"

    print("KERNEL_OK")
</pallas_src>

<mosaic_0001>
module attributes {stable_mosaic.version = 11 : i64} {
  func.func @_fused_linear_kernel(%arg0: i32, %arg1: memref<2x1024xf32, #tpu.memory_space<vmem>>, %arg2: memref<2x432xf32, #tpu.memory_space<vmem>>, %arg3: memref<32x1024xf32, #tpu.memory_space<vmem>>, %arg4: memref<32x432xf32, #tpu.memory_space<vmem>>, %arg5: memref<1x32xf32, #tpu.memory_space<vmem>>, %arg6: memref<2x32xf32, #tpu.memory_space<vmem>>) attributes {dimension_semantics = [#tpu.dimension_semantics<arbitrary>], iteration_bounds = array<i64: 1>, scalar_prefetch = 0 : i64, scratch_operands = 0 : i64, tpu.core_type = #tpu.core_type<tc>, window_params = [{pipeline_mode = #tpu.pipeline_mode<synchronous>, transform_indices = @transform_0, window_bounds = array<i64: 2, 1024>}, {pipeline_mode = #tpu.pipeline_mode<synchronous>, transform_indices = @transform_1, window_bounds = array<i64: 2, 432>}, {pipeline_mode = #tpu.pipeline_mode<synchronous>, transform_indices = @transform_2, window_bounds = array<i64: 32, 1024>}, {pipeline_mode = #tpu.pipeline_mode<synchronous>, transform_indices = @transform_3, window_bounds = array<i64: 32, 432>}, {pipeline_mode = #tpu.pipeline_mode<synchronous>, transform_indices = @transform_4, window_bounds = array<i64: 1, 32>}, {pipeline_mode = #tpu.pipeline_mode<synchronous>, transform_indices = @transform_5, window_bounds = array<i64: 2, 32>}]} {
    %c0 = arith.constant 0 : index
    %c0_0 = arith.constant 0 : index
    %0 = vector.load %arg1[%c0, %c0_0] : memref<2x1024xf32, #tpu.memory_space<vmem>>, vector<2x1024xf32>
    %c0_1 = arith.constant 0 : index
    %c0_2 = arith.constant 0 : index
    %1 = vector.load %arg3[%c0_1, %c0_2] : memref<32x1024xf32, #tpu.memory_space<vmem>>, vector<32x1024xf32>
    %cst = arith.constant dense<0.000000e+00> : vector<2x32xf32>
    %2 = tpu.matmul %0, %1, %cst {dimension_numbers = #tpu.dot_dimension_numbers<[1], [1], [0], [0], [0, 0, 1, 0], [], []>} : vector<2x1024xf32>, vector<32x1024xf32>, vector<2x32xf32> -> vector<2x32xf32>
    %c0_3 = arith.constant 0 : index
    %c0_4 = arith.constant 0 : index
    %3 = vector.load %arg2[%c0_3, %c0_4] : memref<2x432xf32, #tpu.memory_space<vmem>>, vector<2x432xf32>
    %c0_5 = arith.constant 0 : index
    %c0_6 = arith.constant 0 : index
    %4 = vector.load %arg4[%c0_5, %c0_6] : memref<32x432xf32, #tpu.memory_space<vmem>>, vector<32x432xf32>
    %cst_7 = arith.constant dense<0.000000e+00> : vector<2x32xf32>
    %5 = tpu.matmul %3, %4, %cst_7 {dimension_numbers = #tpu.dot_dimension_numbers<[1], [1], [0], [0], [0, 0, 1, 0], [], []>} : vector<2x432xf32>, vector<32x432xf32>, vector<2x32xf32> -> vector<2x32xf32>
    %6 = arith.addf %2, %5 : vector<2x32xf32>
    %c0_8 = arith.constant 0 : index
    %c0_9 = arith.constant 0 : index
    %7 = vector.load %arg5[%c0_8, %c0_9] : memref<1x32xf32, #tpu.memory_space<vmem>>, vector<1x32xf32>
    %8 = vector.broadcast %7 : vector<1x32xf32> to vector<2x32xf32>
    %9 = arith.addf %6, %8 : vector<2x32xf32>
    %c0_10 = arith.constant 0 : index
    %c0_11 = arith.constant 0 : index
    %10 = vector.load %arg6[%c0_10, %c0_11] : memref<2x32xf32, #tpu.memory_space<vmem>>, vector<2x32xf32>
    tpu.vector_store %arg6[%c0_10, %c0_11], %9 {strides = array<i32>} : memref<2x32xf32, #tpu.memory_space<vmem>>, vector<2x32xf32>,
    return
  }
  func.func @transform_0(%arg0: i32) -> (i32, i32) {
    %c0_i32 = arith.constant 0 : i32
    %c0_i32_0 = arith.constant 0 : i32
    %c0_i32_1 = arith.constant 0 : i32
    return %c0_i32, %c0_i32_0 : i32, i32
  }
  func.func @transform_1(%arg0: i32) -> (i32, i32) {
    %c0_i32 = arith.constant 0 : i32
    %c0_i32_0 = arith.constant 0 : i32
    %c0_i32_1 = arith.constant 0 : i32
    return %c0_i32, %c0_i32_0 : i32, i32
  }
  func.func @transform_2(%arg0: i32) -> (i32, i32) {
    %c0_i32 = arith.constant 0 : i32
    %c0_i32_0 = arith.constant 0 : i32
    %c0_i32_1 = arith.constant 0 : i32
    return %c0_i32, %c0_i32_0 : i32, i32
  }
  func.func @transform_3(%arg0: i32) -> (i32, i32) {
    %c0_i32 = arith.constant 0 : i32
    %c0_i32_0 = arith.constant 0 : i32
    %c0_i32_1 = arith.constant 0 : i32
    return %c0_i32, %c0_i32_0 : i32, i32
  }
  func.func @transform_4(%arg0: i32) -> (i32, i32) {
    %c0_i32 = arith.constant 0 : i32
    %c0_i32_0 = arith.constant 0 : i32
    %c0_i32_1 = arith.constant 0 : i32
    return %c0_i32, %c0_i32_0 : i32, i32
  }
  func.func @transform_5(%arg0: i32) -> (i32, i32) {
    %c0_i32 = arith.constant 0 : i32
    %c0_i32_0 = arith.constant 0 : i32
    %c0_i32_1 = arith.constant 0 : i32
    return %c0_i32, %c0_i32_0 : i32, i32
  }
}

</mosaic_0001>

<llo_original>
// kernel: lin_forward.1
$region0: #{lin_forward.1}
  #allocation0 [shape = 'u32[]', space=smem, size = 0x4, offset = 0x4, fixed_abs, tag = 'smem constant byte address 0x4 - core index']
  #allocation1 [shape = 'u32[144,128]{1,0:T(1,128)}', space=vmem, size = 0x12000, scoped, tag = 'internal scratch']
  %s0 = inlined_call_operand.vmem [shape: f32[2,1024], index: 0, kind: input, shape index: {}]
  %s1 = inlined_call_operand.vmem [shape: f32[2,432], index: 1, kind: input, shape index: {}]
  %s2 = inlined_call_operand.vmem [shape: f32[32,1024], index: 2, kind: input, shape index: {}]
  %s3 = inlined_call_operand.vmem [shape: f32[32,432], index: 3, kind: input, shape index: {}]
  %s4 = inlined_call_operand.vmem [shape: f32[1,32], index: 4, kind: input, shape index: {}]
  %s5 = inlined_call_operand.hbm [shape: f32[2,32], index: 5, kind: output, shape index: {}]
  %s6 = sld [smem:[#allocation0]]
  $region30: #{lin_forward.1} parent=0
    _
  %s8 = ssub.s32 1, %s6
  %s9 = scalar_select 0, %s8, %s6
  $region1: #{lin_forward.1} parent=0
    #allocation2 [shape = 'u8[1024]{0}', space=vmem, size = 0x400, scoped, tag = 'output window, operand 0, single buffered']
    #allocation3 [shape = 's32[1]{0}', space=sflag, size = 0x4, scoped, tag = 'scoped memory for lin_forward.1']
    %10 = vsyncpa [#allocation3], 0
    // Predicated region
    $region2: #{lin_forward.1} parent=1 // pred_check
      _
    $region3: #{lin_forward.1} parent=1 // pred_check_branch
      %12 = sbr.rel (0) target = $region5
    $region4: #{lin_forward.1} parent=1 // pred_region
      _
    $region5: #{lin_forward.1} parent=1 // pred_fallthru
      _
    // Predicated region
    $region6: #{lin_forward.1} parent=1 // pred_check
      _
    $region7: #{lin_forward.1} parent=1 // pred_check_branch
      %14 = sbr.rel (0) target = $region9
    $region8: #{lin_forward.1} parent=1 // pred_region
      _
    $region9: #{lin_forward.1} parent=1 // pred_fallthru
      _
    // Predicated region
    $region10: #{lin_forward.1} parent=1 // pred_check
      _
    $region11: #{lin_forward.1} parent=1 // pred_check_branch
      %16 = sbr.rel (0) target = $region13
    $region12: #{lin_forward.1} parent=1 // pred_region
      _
    $region13: #{lin_forward.1} parent=1 // pred_fallthru
      _
    // Predicated region
    $region14: #{lin_forward.1} parent=1 // pred_check
      _
    $region15: #{lin_forward.1} parent=1 // pred_check_branch
      %18 = sbr.rel (0) target = $region17
    $region16: #{lin_forward.1} parent=1 // pred_region
      _
    $region17: #{lin_forward.1} parent=1 // pred_fallthru
      _
    // Predicated region
    $region18: #{lin_forward.1} parent=1 // pred_check
      _
    $region19: #{lin_forward.1} parent=1 // pred_check_branch
      %20 = sbr.rel (0) target = $region21
    $region20: #{lin_forward.1} parent=1 // pred_region
      _
    $region21: #{lin_forward.1} parent=1 // pred_fallthru
      _
    %v21 = vld [vmem:[%s0] sm:$0xff]
    %v22 = vld [vmem:[%s0 + $0x8] sm:$0xff]
    %v23 = vld [vmem:[%s2] sm:$0xff]
    %v24 = vld [vmem:[%s2 + $0x8] sm:$0xff]
    %v25 = vld [vmem:[%s2 + $0x10] sm:$0xff]
    %v26 = vld [vmem:[%s2 + $0x18] sm:$0xff]
    %v27 = vld [vmem:[%s2 + $0x20] sm:$0xff]
    %v28 = vld [vmem:[%s2 + $0x28] sm:$0xff]
    %v29 = vld [vmem:[%s2 + $0x30] sm:$0xff]
    %v30 = vld [vmem:[%s2 + $0x38] sm:$0xff]
    %v31 = vld [vmem:[%s2 + $0x40] sm:$0xff]
    %v32 = vld [vmem:[%s2 + $0x48] sm:$0xff]
    %v33 = vld [vmem:[%s2 + $0x50] sm:$0xff]
    %v34 = vld [vmem:[%s2 + $0x58] sm:$0xff]
    %v35 = vld [vmem:[%s2 + $0x60] sm:$0xff]
    %v36 = vld [vmem:[%s2 + $0x68] sm:$0xff]
    %v37 = vld [vmem:[%s2 + $0x70] sm:$0xff]
    %v38 = vld [vmem:[%s2 + $0x78] sm:$0xff]
    %v39 = vld [vmem:[%s2 + $0x80] sm:$0xff]
    %v40 = vld [vmem:[%s2 + $0x88] sm:$0xff]
    %v41 = vld [vmem:[%s2 + $0x90] sm:$0xff]
    %v42 = vld [vmem:[%s2 + $0x98] sm:$0xff]
    %v43 = vld [vmem:[%s2 + $0xa0] sm:$0xff]
    %v44 = vld [vmem:[%s2 + $0xa8] sm:$0xff]
    %v45 = vld [vmem:[%s2 + $0xb0] sm:$0xff]
    %v46 = vld [vmem:[%s2 + $0xb8] sm:$0xff]
    %v47 = vld [vmem:[%s2 + $0xc0] sm:$0xff]
    %v48 = vld [vmem:[%s2 + $0xc8] sm:$0xff]
    %v49 = vld [vmem:[%s2 + $0xd0] sm:$0xff]
    %v50 = vld [vmem:[%s2 + $0xd8] sm:$0xff]
    %v51 = vld [vmem:[%s2 + $0xe0] sm:$0xff]
    %v52 = vld [vmem:[%s2 + $0xe8] sm:$0xff]
    %v53 = vld [vmem:[%s2 + $0xf0] sm:$0xff]
    %v54 = vld [vmem:[%s2 + $0xf8] sm:$0xff]
    %v55 = vld [vmem:[%s1] sm:$0xff]
    %v56 = vld [vmem:[%s3] sm:$0xff]
    %v57 = vld [vmem:[%s3 + $0x8] sm:$0xff]
    %v58 = vld [vmem:[%s3 + $0x10] sm:$0xff]
    %v59 = vld [vmem:[%s3 + $0x18] sm:$0xff]
    %v60 = vld [vmem:[%s3 + $0x20] sm:$0xff]
    %v61 = vld [vmem:[%s3 + $0x28] sm:$0xff]
    %v62 = vld [vmem:[%s3 + $0x30] sm:$0xff]
    %v63 = vld [vmem:[%s3 + $0x38] sm:$0xff]
    %v64 = vld [vmem:[%s3 + $0x40] sm:$0xff]
    %v65 = vld [vmem:[%s3 + $0x48] sm:$0xff]
    %v66 = vld [vmem:[%s3 + $0x50] sm:$0xff]
    %v67 = vld [vmem:[%s3 + $0x58] sm:$0xff]
    %v68 = vld [vmem:[%s3 + $0x60] sm:$0xff]
    %v69 = vld [vmem:[%s3 + $0x68] sm:$0xff]
    %v70 = vld [vmem:[%s3 + $0x70] sm:$0xff]
    %v71 = vld [vmem:[%s3 + $0x78] sm:$0xff]
    %v73 = vcombine.high %v55, %v55
    %v75 = vunpack.c.l.s4 1983009808
    %v76 = vunpack.c.0.s8 %v75
    %v77 = vlaneseq
    %v78 = vshrl.u32 %v77, 7
    %v79 = vsub.s32 %v76, %v78
    %v80 = vrot.slane %v55, %v79
    %v82 = vunpack.c.l.s4 1983009808
    %v83 = vunpack.c.0.s8 %v82
    %v84 = vlaneseq
    %v85 = vshrl.u32 %v84, 7
    %v86 = vsub.s32 %v83, %v85
    %v87 = vrot.slane %v73, %v86
    %v88 = vcombine.high %v80, %v80
    %v89 = vcombine.high %v87, %v87
    %vm93 = vcmask 392192
    %v94 = vsel %vm93, %v89, 0
    %v97 = vsel %vm93, %v59, 0
    %v100 = vsel %vm93, %v63, 0
    %v103 = vsel %vm93, %v67, 0
    %v106 = vsel %vm93, %v71, 0
    %108 = vmatprep.subr.mxu0 0.0
    %109 = vmatpush1.xpose.msra.mxu0 0.0
    %110 = vmatprep.subr.mxu0 0.0
    %111 = vmatpush1.xpose.msra.mxu0 0.0
    %112 = vmatprep.subr.mxu0 0.0
    %113 = vmatpush1.xpose.msra.mxu0 0.0
    %114 = vmatprep.subr.mxu0 0.0
    %115 = vmatpush1.xpose.msra.mxu0 0.0
    %116 = vmatprep.subr.mxu0 0.0
    %117 = vmatpush1.xpose.msra.mxu0 0.0
    %118 = vmatprep.subr.mxu0 0.0
    %119 = vmatpush1.xpose.msra.mxu0 0.0
    %120 = vmatprep.subr.mxu0 0.0
    %121 = vmatpush1.xpose.msra.mxu0 0.0
    %122 = vmatprep.subr.mxu0 0.0
    %123 = vmatpush1.xpose.msra.mxu0 0.0
    %124 = vmatprep.subr.mxu0 0.0
    %125 = vmatpush1.xpose.msra.mxu0 0.0
    %126 = vmatprep.subr.mxu0 0.0
    %127 = vmatpush1.xpose.msra.mxu0 0.0
    %128 = vmatprep.subr.mxu0 0.0
    %129 = vmatpush1.xpose.msra.mxu0 0.0
    %130 = vmatprep.subr.mxu0 0.0
    %131 = vmatpush1.xpose.msra.mxu0 0.0
    %132 = vmatprep.subr.mxu0 %v69
    %133 = vmatpush1.xpose.msra.mxu0 %v68
    %134 = vmatprep.subr.mxu0 %v65
    %135 = vmatpush1.xpose.msra.mxu0 %v64
    %136 = vmatprep.subr.mxu0 %v61
    %137 = vmatpush1.xpose.msra.mxu0 %v60
    %138 = vmatprep.subr.mxu0 %v57
    %139 = vmatpush1.xpose.msra.mxu0 %v56
    %140 = vmatprep.subr.mxu0 0.0
    %141 = vmatpush2.xpose.msra.mxu0 0.0
    %142 = vmatprep.subr.mxu0 0.0
    %143 = vmatpush2.xpose.msra.mxu0 0.0
    %144 = vmatprep.subr.mxu0 0.0
    %145 = vmatpush2.xpose.msra.mxu0 0.0
    %146 = vmatprep.subr.mxu0 0.0
    %147 = vmatpush2.xpose.msra.mxu0 0.0
    %148 = vmatprep.subr.mxu0 0.0
    %149 = vmatpush2.xpose.msra.mxu0 0.0
    %150 = vmatprep.subr.mxu0 0.0
    %151 = vmatpush2.xpose.msra.mxu0 0.0
    %152 = vmatprep.subr.mxu0 0.0
    %153 = vmatpush2.xpose.msra.mxu0 0.0
    %154 = vmatprep.subr.mxu0 0.0
    %155 = vmatpush2.xpose.msra.mxu0 0.0
    %156 = vmatprep.subr.mxu0 0.0
    %157 = vmatpush2.xpose.msra.mxu0 0.0
    %158 = vmatprep.subr.mxu0 0.0
    %159 = vmatpush2.xpose.msra.mxu0 0.0
    %160 = vmatprep.subr.mxu0 0.0
    %161 = vmatpush2.xpose.msra.mxu0 0.0
    %162 = vmatprep.subr.mxu0 0.0
    %163 = vmatpush2.xpose.msra.mxu0 0.0
    %164 = vmatprep.subr.mxu0 0.0
    %165 = vmatpush2.xpose.msra.mxu0 0.0
    %166 = vmatprep.subr.mxu0 0.0
    %167 = vmatpush2.xpose.msra.mxu0 0.0
    %168 = vmatprep.subr.mxu0 0.0
    %169 = vmatpush2.xpose.msra.mxu0 0.0
    %170 = vmatprep.subr.mxu0 0.0
    %171 = vmatpush2.xpose.msra.mxu0 0.0
    %172 = vmatprep.mubr.f32.mxu0 %v88
    %173 = vmatmul.mubr.f32.gmra.mxu0 %v80
    %v174 = vpop.f32.mrf.mxu0
    %v175 = vadd.f32 0.0, %v174
    %v176 = vpop.f32.mrf.mxu0
    %177 = vdwg.mxu0
    %178 = vmatprep.subr.mxu0 0.0
    %179 = vmatpush1.xpose.msra.mxu0 0.0
    %180 = vmatprep.subr.mxu0 0.0
    %181 = vmatpush1.xpose.msra.mxu0 0.0
    %182 = vmatprep.subr.mxu0 0.0
    %183 = vmatpush1.xpose.msra.mxu0 0.0
    %184 = vmatprep.subr.mxu0 0.0
    %185 = vmatpush1.xpose.msra.mxu0 0.0
    %186 = vmatprep.subr.mxu0 0.0
    %187 = vmatpush1.xpose.msra.mxu0 0.0
    %188 = vmatprep.subr.mxu0 0.0
    %189 = vmatpush1.xpose.msra.mxu0 0.0
    %190 = vmatprep.subr.mxu0 0.0
    %191 = vmatpush1.xpose.msra.mxu0 0.0
    %192 = vmatprep.subr.mxu0 0.0
    %193 = vmatpush1.xpose.msra.mxu0 0.0
    %194 = vmatprep.subr.mxu0 0.0
    %195 = vmatpush1.xpose.msra.mxu0 0.0
    %196 = vmatprep.subr.mxu0 0.0
    %197 = vmatpush1.xpose.msra.mxu0 0.0
    %198 = vmatprep.subr.mxu0 0.0
    %199 = vmatpush1.xpose.msra.mxu0 0.0
    %200 = vmatprep.subr.mxu0 0.0
    %201 = vmatpush1.xpose.msra.mxu0 0.0
    %202 = vmatprep.subr.mxu0 %v106
    %203 = vmatpush1.xpose.msra.mxu0 %v70
    %204 = vmatprep.subr.mxu0 %v103
    %205 = vmatpush1.xpose.msra.mxu0 %v66
    %206 = vmatprep.subr.mxu0 %v100
    %207 = vmatpush1.xpose.msra.mxu0 %v62
    %208 = vmatprep.subr.mxu0 %v97
    %209 = vmatpush1.xpose.msra.mxu0 %v58
    %210 = vmatprep.subr.mxu0 0.0
    %211 = vmatpush2.xpose.msra.mxu0 0.0
    %212 = vmatprep.subr.mxu0 0.0
    %213 = vmatpush2.xpose.msra.mxu0 0.0
    %214 = vmatprep.subr.mxu0 0.0
    %215 = vmatpush2.xpose.msra.mxu0 0.0
    %216 = vmatprep.subr.mxu0 0.0
    %217 = vmatpush2.xpose.msra.mxu0 0.0
    %218 = vmatprep.subr.mxu0 0.0
    %219 = vmatpush2.xpose.msra.mxu0 0.0
    %220 = vmatprep.subr.mxu0 0.0
    %221 = vmatpush2.xpose.msra.mxu0 0.0
    %222 = vmatprep.subr.mxu0 0.0
    %223 = vmatpush2.xpose.msra.mxu0 0.0
    %224 = vmatprep.subr.mxu0 0.0
    %225 = vmatpush2.xpose.msra.mxu0 0.0
    %226 = vmatprep.subr.mxu0 0.0
    %227 = vmatpush2.xpose.msra.mxu0 0.0
    %228 = vmatprep.subr.mxu0 0.0
    %229 = vmatpush2.xpose.msra.mxu0 0.0
    %230 = vmatprep.subr.mxu0 0.0
    %231 = vmatpush2.xpose.msra.mxu0 0.0
    %232 = vmatprep.subr.mxu0 0.0
    %233 = vmatpush2.xpose.msra.mxu0 0.0
    %234 = vmatprep.subr.mxu0 0.0
    %235 = vmatpush2.xpose.msra.mxu0 0.0
    %236 = vmatprep.subr.mxu0 0.0
    %237 = vmatpush2.xpose.msra.mxu0 0.0
    %238 = vmatprep.subr.mxu0 0.0
    %239 = vmatpush2.xpose.msra.mxu0 0.0
    %240 = vmatprep.subr.mxu0 0.0
    %241 = vmatpush2.xpose.msra.mxu0 0.0
    %242 = vmatprep.mubr.f32.mxu0 %v94
    %243 = vmatmul.mubr.f32.gmra.mxu0 %v87
    %v244 = vpop.f32.mrf.mxu0
    %v245 = vadd.f32 %v175, %v244
    %v246 = vpop.f32.mrf.mxu0
    %247 = vdwg.mxu0
    %v250 = vcombine.high %v21, %v21
    %v252 = vunpack.c.l.s4 1983009808
    %v253 = vunpack.c.0.s8 %v252
    %v254 = vlaneseq
    %v255 = vshrl.u32 %v254, 7
    %v256 = vsub.s32 %v253, %v255
    %v257 = vrot.slane %v21, %v256
    %v259 = vunpack.c.l.s4 1983009808
    %v260 = vunpack.c.0.s8 %v259
    %v261 = vlaneseq
    %v262 = vshrl.u32 %v261, 7
    %v263 = vsub.s32 %v260, %v262
    %v264 = vrot.slane %v250, %v263
    %v265 = vcombine.high %v257, %v257
    %v266 = vcombine.high %v264, %v264
    %v267 = vcombine.high %v22, %v22
    %v269 = vunpack.c.l.s4 1983009808
    %v270 = vunpack.c.0.s8 %v269
    %v271 = vlaneseq
    %v272 = vshrl.u32 %v271, 7
    %v273 = vsub.s32 %v270, %v272
    %v274 = vrot.slane %v22, %v273
    %v276 = vunpack.c.l.s4 1983009808
    %v277 = vunpack.c.0.s8 %v276
    %v278 = vlaneseq
    %v279 = vshrl.u32 %v278, 7
    %v280 = vsub.s32 %v277, %v279
    %v281 = vrot.slane %v267, %v280
    %v282 = vcombine.high %v274, %v274
    %v283 = vcombine.high %v281, %v281
    %292 = vmatprep.subr.mxu0 0.0
    %293 = vmatpush1.xpose.msra.mxu0 0.0
    %294 = vmatprep.subr.mxu0 0.0
    %295 = vmatpush1.xpose.msra.mxu0 0.0
    %296 = vmatprep.subr.mxu0 0.0
    %297 = vmatpush1.xpose.msra.mxu0 0.0
    %298 = vmatprep.subr.mxu0 0.0
    %299 = vmatpush1.xpose.msra.mxu0 0.0
    %300 = vmatprep.subr.mxu0 0.0
    %301 = vmatpush1.xpose.msra.mxu0 0.0
    %302 = vmatprep.subr.mxu0 0.0
    %303 = vmatpush1.xpose.msra.mxu0 0.0
    %304 = vmatprep.subr.mxu0 0.0
    %305 = vmatpush1.xpose.msra.mxu0 0.0
    %306 = vmatprep.subr.mxu0 0.0
    %307 = vmatpush1.xpose.msra.mxu0 0.0
    %308 = vmatprep.subr.mxu0 0.0
    %309 = vmatpush1.xpose.msra.mxu0 0.0
    %310 = vmatprep.subr.mxu0 0.0
    %311 = vmatpush1.xpose.msra.mxu0 0.0
    %312 = vmatprep.subr.mxu0 0.0
    %313 = vmatpush1.xpose.msra.mxu0 0.0
    %314 = vmatprep.subr.mxu0 0.0
    %315 = vmatpush1.xpose.msra.mxu0 0.0
    %316 = vmatprep.subr.mxu0 %v48
    %317 = vmatpush1.xpose.msra.mxu0 %v47
    %318 = vmatprep.subr.mxu0 %v40
    %319 = vmatpush1.xpose.msra.mxu0 %v39
    %320 = vmatprep.subr.mxu0 %v32
    %321 = vmatpush1.xpose.msra.mxu0 %v31
    %322 = vmatprep.subr.mxu0 %v24
    %323 = vmatpush1.xpose.msra.mxu0 %v23
    %324 = vmatprep.subr.mxu0 0.0
    %325 = vmatpush2.xpose.msra.mxu0 0.0
    %326 = vmatprep.subr.mxu0 0.0
    %327 = vmatpush2.xpose.msra.mxu0 0.0
    %328 = vmatprep.subr.mxu0 0.0
    %329 = vmatpush2.xpose.msra.mxu0 0.0
    %330 = vmatprep.subr.mxu0 0.0
    %331 = vmatpush2.xpose.msra.mxu0 0.0
    %332 = vmatprep.subr.mxu0 0.0
    %333 = vmatpush2.xpose.msra.mxu0 0.0
    %334 = vmatprep.subr.mxu0 0.0
    %335 = vmatpush2.xpose.msra.mxu0 0.0
    %336 = vmatprep.subr.mxu0 0.0
    %337 = vmatpush2.xpose.msra.mxu0 0.0
    %338 = vmatprep.subr.mxu0 0.0
    %339 = vmatpush2.xpose.msra.mxu0 0.0
    %340 = vmatprep.subr.mxu0 0.0
    %341 = vmatpush2.xpose.msra.mxu0 0.0
    %342 = vmatprep.subr.mxu0 0.0
    %343 = vmatpush2.xpose.msra.mxu0 0.0
    %344 = vmatprep.subr.mxu0 0.0
    %345 = vmatpush2.xpose.msra.mxu0 0.0
    %346 = vmatprep.subr.mxu0 0.0
    %347 = vmatpush2.xpose.msra.mxu0 0.0
    %348 = vmatprep.subr.mxu0 0.0
    %349 = vmatpush2.xpose.msra.mxu0 0.0
    %350 = vmatprep.subr.mxu0 0.0
    %351 = vmatpush2.xpose.msra.mxu0 0.0
    %352 = vmatprep.subr.mxu0 0.0
    %353 = vmatpush2.xpose.msra.mxu0 0.0
    %354 = vmatprep.subr.mxu0 0.0
    %355 = vmatpush2.xpose.msra.mxu0 0.0
    %356 = vmatprep.mubr.f32.mxu0 %v265
    %357 = vmatmul.mubr.f32.gmra.mxu0 %v257
    %v358 = vpop.f32.mrf.mxu0
    %v359 = vadd.f32 %v245, %v358
    %v360 = vpop.f32.mrf.mxu0
    %361 = vdwg.mxu0
    %362 = vmatprep.subr.mxu0 0.0
    %363 = vmatpush1.xpose.msra.mxu0 0.0
    %364 = vmatprep.subr.mxu0 0.0
    %365 = vmatpush1.xpose.msra.mxu0 0.0
    %366 = vmatprep.subr.mxu0 0.0
    %367 = vmatpush1.xpose.msra.mxu0 0.0
    %368 = vmatprep.subr.mxu0 0.0
    %369 = vmatpush1.xpose.msra.mxu0 0.0
    %370 = vmatprep.subr.mxu0 0.0
    %371 = vmatpush1.xpose.msra.mxu0 0.0
    %372 = vmatprep.subr.mxu0 0.0
    %373 = vmatpush1.xpose.msra.mxu0 0.0
    %374 = vmatprep.subr.mxu0 0.0
    %375 = vmatpush1.xpose.msra.mxu0 0.0
    %376 = vmatprep.subr.mxu0 0.0
    %377 = vmatpush1.xpose.msra.mxu0 0.0
    %378 = vmatprep.subr.mxu0 0.0
    %379 = vmatpush1.xpose.msra.mxu0 0.0
    %380 = vmatprep.subr.mxu0 0.0
    %381 = vmatpush1.xpose.msra.mxu0 0.0
    %382 = vmatprep.subr.mxu0 0.0
    %383 = vmatpush1.xpose.msra.mxu0 0.0
    %384 = vmatprep.subr.mxu0 0.0
    %385 = vmatpush1.xpose.msra.mxu0 0.0
    %386 = vmatprep.subr.mxu0 %v50
    %387 = vmatpush1.xpose.msra.mxu0 %v49
    %388 = vmatprep.subr.mxu0 %v42
    %389 = vmatpush1.xpose.msra.mxu0 %v41
    %390 = vmatprep.subr.mxu0 %v34
    %391 = vmatpush1.xpose.msra.mxu0 %v33
    %392 = vmatprep.subr.mxu0 %v26
    %393 = vmatpush1.xpose.msra.mxu0 %v25
    %394 = vmatprep.subr.mxu0 0.0
    %395 = vmatpush2.xpose.msra.mxu0 0.0
    %396 = vmatprep.subr.mxu0 0.0
    %397 = vmatpush2.xpose.msra.mxu0 0.0
    %398 = vmatprep.subr.mxu0 0.0
    %399 = vmatpush2.xpose.msra.mxu0 0.0
    %400 = vmatprep.subr.mxu0 0.0
    %401 = vmatpush2.xpose.msra.mxu0 0.0
    %402 = vmatprep.subr.mxu0 0.0
    %403 = vmatpush2.xpose.msra.mxu0 0.0
    %404 = vmatprep.subr.mxu0 0.0
    %405 = vmatpush2.xpose.msra.mxu0 0.0
    %406 = vmatprep.subr.mxu0 0.0
    %407 = vmatpush2.xpose.msra.mxu0 0.0
    %408 = vmatprep.subr.mxu0 0.0
    %409 = vmatpush2.xpose.msra.mxu0 0.0
    %410 = vmatprep.subr.mxu0 0.0
    %411 = vmatpush2.xpose.msra.mxu0 0.0
    %412 = vmatprep.subr.mxu0 0.0
    %413 = vmatpush2.xpose.msra.mxu0 0.0
    %414 = vmatprep.subr.mxu0 0.0
    %415 = vmatpush2.xpose.msra.mxu0 0.0
    %416 = vmatprep.subr.mxu0 0.0
    %417 = vmatpush2.xpose.msra.mxu0 0.0
    %418 = vmatprep.subr.mxu0 0.0
    %419 = vmatpush2.xpose.msra.mxu0 0.0
    %420 = vmatprep.subr.mxu0 0.0
    %421 = vmatpush2.xpose.msra.mxu0 0.0
    %422 = vmatprep.subr.mxu0 0.0
    %423 = vmatpush2.xpose.msra.mxu0 0.0
    %424 = vmatprep.subr.mxu0 0.0
    %425 = vmatpush2.xpose.msra.mxu0 0.0
    %426 = vmatprep.mubr.f32.mxu0 %v266
    %427 = vmatmul.mubr.f32.gmra.mxu0 %v264
    %v428 = vpop.f32.mrf.mxu0
    %v429 = vadd.f32 %v359, %v428
    %v430 = vpop.f32.mrf.mxu0
    %431 = vdwg.mxu0
    %432 = vmatprep.subr.mxu0 0.0
    %433 = vmatpush1.xpose.msra.mxu0 0.0
    %434 = vmatprep.subr.mxu0 0.0
    %435 = vmatpush1.xpose.msra.mxu0 0.0
    %436 = vmatprep.subr.mxu0 0.0
    %437 = vmatpush1.xpose.msra.mxu0 0.0
    %438 = vmatprep.subr.mxu0 0.0
    %439 = vmatpush1.xpose.msra.mxu0 0.0
    %440 = vmatprep.subr.mxu0 0.0
    %441 = vmatpush1.xpose.msra.mxu0 0.0
    %442 = vmatprep.subr.mxu0 0.0
    %443 = vmatpush1.xpose.msra.mxu0 0.0
    %444 = vmatprep.subr.mxu0 0.0
    %445 = vmatpush1.xpose.msra.mxu0 0.0
    %446 = vmatprep.subr.mxu0 0.0
    %447 = vmatpush1.xpose.msra.mxu0 0.0
    %448 = vmatprep.subr.mxu0 0.0
    %449 = vmatpush1.xpose.msra.mxu0 0.0
    %450 = vmatprep.subr.mxu0 0.0
    %451 = vmatpush1.xpose.msra.mxu0 0.0
    %452 = vmatprep.subr.mxu0 0.0
    %453 = vmatpush1.xpose.msra.mxu0 0.0
    %454 = vmatprep.subr.mxu0 0.0
    %455 = vmatpush1.xpose.msra.mxu0 0.0
    %456 = vmatprep.subr.mxu0 %v52
    %457 = vmatpush1.xpose.msra.mxu0 %v51
    %458 = vmatprep.subr.mxu0 %v44
    %459 = vmatpush1.xpose.msra.mxu0 %v43
    %460 = vmatprep.subr.mxu0 %v36
    %461 = vmatpush1.xpose.msra.mxu0 %v35
    %462 = vmatprep.subr.mxu0 %v28
    %463 = vmatpush1.xpose.msra.mxu0 %v27
    %464 = vmatprep.subr.mxu0 0.0
    %465 = vmatpush2.xpose.msra.mxu0 0.0
    %466 = vmatprep.subr.mxu0 0.0
    %467 = vmatpush2.xpose.msra.mxu0 0.0
    %468 = vmatprep.subr.mxu0 0.0
    %469 = vmatpush2.xpose.msra.mxu0 0.0
    %470 = vmatprep.subr.mxu0 0.0
    %471 = vmatpush2.xpose.msra.mxu0 0.0
    %472 = vmatprep.subr.mxu0 0.0
    %473 = vmatpush2.xpose.msra.mxu0 0.0
    %474 = vmatprep.subr.mxu0 0.0
    %475 = vmatpush2.xpose.msra.mxu0 0.0
    %476 = vmatprep.subr.mxu0 0.0
    %477 = vmatpush2.xpose.msra.mxu0 0.0
    %478 = vmatprep.subr.mxu0 0.0
    %479 = vmatpush2.xpose.msra.mxu0 0.0
    %480 = vmatprep.subr.mxu0 0.0
    %481 = vmatpush2.xpose.msra.mxu0 0.0
    %482 = vmatprep.subr.mxu0 0.0
    %483 = vmatpush2.xpose.msra.mxu0 0.0
    %484 = vmatprep.subr.mxu0 0.0
    %485 = vmatpush2.xpose.msra.mxu0 0.0
    %486 = vmatprep.subr.mxu0 0.0
    %487 = vmatpush2.xpose.msra.mxu0 0.0
    %488 = vmatprep.subr.mxu0 0.0
    %489 = vmatpush2.xpose.msra.mxu0 0.0
    %490 = vmatprep.subr.mxu0 0.0
    %491 = vmatpush2.xpose.msra.mxu0 0.0
    %492 = vmatprep.subr.mxu0 0.0
    %493 = vmatpush2.xpose.msra.mxu0 0.0
    %494 = vmatprep.subr.mxu0 0.0
    %495 = vmatpush2.xpose.msra.mxu0 0.0
    %496 = vmatprep.mubr.f32.mxu0 %v282
    %497 = vmatmul.mubr.f32.gmra.mxu0 %v274
    %v498 = vpop.f32.mrf.mxu0
    %v499 = vadd.f32 %v429, %v498
    %v500 = vpop.f32.mrf.mxu0
    %501 = vdwg.mxu0
    %502 = vmatprep.subr.mxu0 0.0
    %503 = vmatpush1.xpose.msra.mxu0 0.0
    %504 = vmatprep.subr.mxu0 0.0
    %505 = vmatpush1.xpose.msra.mxu0 0.0
    %506 = vmatprep.subr.mxu0 0.0
    %507 = vmatpush1.xpose.msra.mxu0 0.0
    %508 = vmatprep.subr.mxu0 0.0
    %509 = vmatpush1.xpose.msra.mxu0 0.0
    %510 = vmatprep.subr.mxu0 0.0
    %511 = vmatpush1.xpose.msra.mxu0 0.0
    %512 = vmatprep.subr.mxu0 0.0
    %513 = vmatpush1.xpose.msra.mxu0 0.0
    %514 = vmatprep.subr.mxu0 0.0
    %515 = vmatpush1.xpose.msra.mxu0 0.0
    %516 = vmatprep.subr.mxu0 0.0
    %517 = vmatpush1.xpose.msra.mxu0 0.0
    %518 = vmatprep.subr.mxu0 0.0
    %519 = vmatpush1.xpose.msra.mxu0 0.0
    %520 = vmatprep.subr.mxu0 0.0
    %521 = vmatpush1.xpose.msra.mxu0 0.0
    %522 = vmatprep.subr.mxu0 0.0
    %523 = vmatpush1.xpose.msra.mxu0 0.0
    %524 = vmatprep.subr.mxu0 0.0
    %525 = vmatpush1.xpose.msra.mxu0 0.0
    %526 = vmatprep.subr.mxu0 %v54
    %527 = vmatpush1.xpose.msra.mxu0 %v53
    %528 = vmatprep.subr.mxu0 %v46
    %529 = vmatpush1.xpose.msra.mxu0 %v45
    %530 = vmatprep.subr.mxu0 %v38
    %531 = vmatpush1.xpose.msra.mxu0 %v37
    %532 = vmatprep.subr.mxu0 %v30
    %533 = vmatpush1.xpose.msra.mxu0 %v29
    %534 = vmatprep.subr.mxu0 0.0
    %535 = vmatpush2.xpose.msra.mxu0 0.0
    %536 = vmatprep.subr.mxu0 0.0
    %537 = vmatpush2.xpose.msra.mxu0 0.0
    %538 = vmatprep.subr.mxu0 0.0
    %539 = vmatpush2.xpose.msra.mxu0 0.0
    %540 = vmatprep.subr.mxu0 0.0
    %541 = vmatpush2.xpose.msra.mxu0 0.0
    %542 = vmatprep.subr.mxu0 0.0
    %543 = vmatpush2.xpose.msra.mxu0 0.0
    %544 = vmatprep.subr.mxu0 0.0
    %545 = vmatpush2.xpose.msra.mxu0 0.0
    %546 = vmatprep.subr.mxu0 0.0
    %547 = vmatpush2.xpose.msra.mxu0 0.0
    %548 = vmatprep.subr.mxu0 0.0
    %549 = vmatpush2.xpose.msra.mxu0 0.0
    %550 = vmatprep.subr.mxu0 0.0
    %551 = vmatpush2.xpose.msra.mxu0 0.0
    %552 = vmatprep.subr.mxu0 0.0
    %553 = vmatpush2.xpose.msra.mxu0 0.0
    %554 = vmatprep.subr.mxu0 0.0
    %555 = vmatpush2.xpose.msra.mxu0 0.0
    %556 = vmatprep.subr.mxu0 0.0
    %557 = vmatpush2.xpose.msra.mxu0 0.0
    %558 = vmatprep.subr.mxu0 0.0
    %559 = vmatpush2.xpose.msra.mxu0 0.0
    %560 = vmatprep.subr.mxu0 0.0
    %561 = vmatpush2.xpose.msra.mxu0 0.0
    %562 = vmatprep.subr.mxu0 0.0
    %563 = vmatpush2.xpose.msra.mxu0 0.0
    %564 = vmatprep.subr.mxu0 0.0
    %565 = vmatpush2.xpose.msra.mxu0 0.0
    %566 = vmatprep.mubr.f32.mxu0 %v283
    %567 = vmatmul.mubr.f32.gmra.mxu0 %v281
    %v568 = vpop.f32.mrf.mxu0
    %v569 = vadd.f32 %v499, %v568
    %v570 = vpop.f32.mrf.mxu0
    %571 = vdwg.mxu0
    %v572 = vld [vmem:[%s4] sm:$0x1]
    %v574 = vlaneseq
    %v575 = vshrl.u32 %v574, 7
    %v576 = vsub.s32 0, %v575
    %v577 = vrot.slane %v572, %v576
    %v579 = vadd.f32 %v569, %v577
    %vm580 = vcmask 254976
    %581 = vst.msk [vmem:[#allocation2] sm:$0x3] %vm580, %v579
    // Predicated region
    $region22: #{lin_forward.1} parent=1 // pred_check
      _
    $region23: #{lin_forward.1} parent=1 // pred_check_branch
      %583 = sbr.rel (0) target = $region25
    $region24: #{lin_forward.1} parent=1 // pred_region
      %s585 = ssub.s32 32, 32
      %586 = vsyncadd [#allocation3], %s585
      %s588 = sshll.u32 [#allocation2], 4
      %s589 = int_to_ptr.vmem [resolvable:$true] %s588
      %591 = dma.vmem_to_hbm [thread:$0]  %s589, 32, %s5, [#allocation3]
    $region25: #{lin_forward.1} parent=1 // pred_fallthru
      _
    // Predicated region
    $region26: #{lin_forward.1} parent=1 // pred_check
      _
    $region27: #{lin_forward.1} parent=1 // pred_check_branch
      %593 = sbr.rel (0) target = $region29
    $region28: #{lin_forward.1} parent=1 // pred_region
      %594 = dma.done [#allocation3], 32
    $region29: #{lin_forward.1} parent=1 // pred_fallthru
      _
    %595 = vsyncpa [#allocation3], 1

</llo_original>
